<compile_context>
chip_gen: v5e
topology: v5e:2x2
jax: 0.10.0
libtpu: 0.0.40
codegen_flags: <defaults>
</compile_context>

<pallas_src>
import functools
import math

import jax
import jax.numpy as jnp
from jax.experimental import pallas as pl
from jax.experimental.pallas import tpu as pltpu


def eca_kernel(x_ref, band_ref, wlin_ref, o_ref, acc_ref, *, hw, hw_tile, need_mask):
    """One (Bt, C, HW_tile) step of the EfficientChannelAttention forward.

    x_ref    : VMEM (Bt, C, HW_tile) -- input activations (native dtype)
    band_ref : VMEM (C, C)  f32      -- banded Toeplitz of the Conv1d taps
    wlin_ref : VMEM (C, 2)  f32      -- Linear(C, 2, bias=False) weight^T
    o_ref    : VMEM (Bt, 2) f32      -- softmax output for this batch tile
    acc_ref  : VMEM (Bt, C) f32      -- spatial-sum accumulator (scratch)
    """
    s = pl.program_id(1)

    @pl.when(s == 0)
    def _init():
        acc_ref[...] = jnp.zeros_like(acc_ref)

    # ---- AdaptiveAvgPool2d(1): partial spatial sum, f32 accumulation ----
    xf = x_ref[...].astype(jnp.float32)                       # (Bt, C, HW_tile)
    if need_mask:
        # Ragged spatial tail: zero out lanes past the true HW extent. jnp.where
        # (not multiply) so stale/NaN values in the padded region cannot propagate.
        lane = jax.lax.broadcasted_iota(jnp.int32, xf.shape, 2)
        xf = jnp.where(s * hw_tile + lane < hw, xf, 0.0)
    acc_ref[...] += jnp.sum(xf, axis=-1)

    @pl.when(s == pl.num_programs(1) - 1)
    def _finalize():
        pooled = acc_ref[...] * (1.0 / hw)                     # (Bt, C)

        # ---- Conv1d(1,1,k, padding=k//2, bias=False) over the channel axis,
        #      expressed as one matmul against the precomputed band ----
        conv = jnp.dot(pooled, band_ref[...],
                       preferred_element_type=jnp.float32)     # (Bt, C)

        # ---- relu_2 ----
        h = jnp.maximum(conv, 0.0)

        # TODO(synk): nn.Dropout(p=0.5) implemented as identity (eval-mode forward).

        # ---- Linear(C, 2, bias=False) ----
        lin = jnp.dot(h, wlin_ref[...],
                      preferred_element_type=jnp.float32)      # (Bt, 2)

        # ---- relu ----
        lin = jnp.maximum(lin, 0.0)

        # ---- softmax over dim=1 (size-2 axis) ----
        m = jnp.max(lin, axis=-1, keepdims=True)
        e = jnp.exp(lin - m)
        o_ref[...] = (e / jnp.sum(e, axis=-1, keepdims=True)).astype(o_ref.dtype)


def _conv_band(conv_w, C):
    """(C, C) matrix M s.t. pooled @ M == PyTorch Conv1d(1,1,k,pad=k//2)(pooled).

    Cross-correlation: out[o] = sum_j w[j] * in[o + j - pad] (zero padded), so
    M[i, o] = w[i - o + pad] when that tap index lies in [0, k)."""
    k = conv_w.shape[-1]
    pad = k // 2
    w = conv_w.reshape(k).astype(jnp.float32)
    row = jnp.arange(C)[:, None]      # input channel index i
    col = jnp.arange(C)[None, :]      # output channel index o
    tap = row - col + pad
    valid = (tap >= 0) & (tap < k)
    return jnp.where(valid, w[jnp.clip(tap, 0, k - 1)], 0.0)


def _pick_tiles(B, C, HW, itemsize, target):
    """Choose (batch_tile, hw_tile) so the x block stays ~target bytes.

    Batch tile is either B (full) or a multiple of 8 so the (Bt, 2) output block
    satisfies the (8, 128) rule. hw_tile is either HW (full) or a multiple of 128.
    """
    row = C * HW * itemsize
    if B * row <= target or B <= 8:
        bt = B
    else:
        bt = (max(8, min(128, target // max(row, 1))) // 8) * 8
        bt = max(8, bt)
        if bt >= B:
            bt = B
    if bt * C * HW * itemsize <= target or HW <= 128:
        hw_tile = HW
    else:
        hw_tile = max(128, (target // (bt * C * itemsize)) // 128 * 128)
        if hw_tile >= HW:
            hw_tile = HW
    return bt, hw_tile


def eca_forward(x, conv_w, lin_w, *, target_block_bytes=2 << 20):
    """x: (B, C, H, W) NCHW; conv_w: (1,1,k); lin_w: (2, C).

    Returns (B, 2, 1, 1) matching the PyTorch module output (eval mode)."""
    B, C, H, W = x.shape
    HW = H * W
    x3 = x.reshape(B, C, HW)                              # native dtype, no upcast, no pad

    band = _conv_band(conv_w, C)                          # (C, C) f32, built once
    wlinT = jnp.transpose(lin_w).astype(jnp.float32)      # (C, 2)

    itemsize = jnp.dtype(x.dtype).itemsize
    bt, hw_tile = _pick_tiles(B, C, HW, itemsize, target_block_bytes)
    grid = (pl.cdiv(B, bt), pl.cdiv(HW, hw_tile))
    need_mask = (HW % hw_tile) != 0

    out = pl.pallas_call(
        functools.partial(eca_kernel, hw=HW, hw_tile=hw_tile, need_mask=need_mask),
        out_shape=jax.ShapeDtypeStruct((B, 2), jnp.float32),
        grid_spec=pltpu.PrefetchScalarGridSpec(
            num_scalar_prefetch=0,
            grid=grid,
            in_specs=[
                pl.BlockSpec((bt, C, hw_tile), lambda b, s: (b, 0, s)),
                pl.BlockSpec((C, C), lambda b, s: (0, 0)),   # grid-invariant, fetched once
                pl.BlockSpec((C, 2), lambda b, s: (0, 0)),   # grid-invariant, fetched once
            ],
            out_specs=pl.BlockSpec((bt, 2), lambda b, s: (b, 0)),
            scratch_shapes=[pltpu.VMEM((bt, C), jnp.float32)],
        ),
        compiler_params=pltpu.CompilerParams(
            dimension_semantics=("parallel", "arbitrary")),
    )(x3, band, wlinT)
    return out.reshape(B, 2, 1, 1)


def eca_reference(x, conv_w, lin_w):
    """Pure-JAX reference mirroring the PyTorch forward (eval mode)."""
    B, C, H, W = x.shape
    k = conv_w.shape[-1]
    pad = k // 2
    pooled = jnp.mean(x.astype(jnp.float32), axis=(2, 3))       # (B, C)
    padded = jnp.pad(pooled, ((0, 0), (pad, pad)))              # zero pad channel axis
    w = conv_w.reshape(k).astype(jnp.float32)
    conv = sum(w[j] * padded[:, j:j + C] for j in range(k))     # (B, C) cross-correlation
    h = jnp.maximum(conv, 0.0)                                  # relu_2
    lin = h @ lin_w.T.astype(jnp.float32)                       # (B, 2)
    lin = jnp.maximum(lin, 0.0)                                 # relu
    sm = jax.nn.softmax(lin, axis=-1)
    return sm.reshape(B, 2, 1, 1)


def _eca_k(C):
    # ECA kernel-size rule from the module __init__ (b=1, gamma=2).
    t = int(abs((math.log2(C) + 1) / 2))
    return t if t % 2 else t + 1


if __name__ == "__main__":
    key = jax.random.PRNGKey(0)

    # --- test 1: module-default small shapes, single spatial tile -------------
    B, C, H, W = 2, 16, 16, 16
    k = _eca_k(C)
    kx, kc, kl, key = jax.random.split(key, 4)
    x = jax.random.normal(kx, (B, C, H, W), dtype=jnp.float32)
    conv_w = jax.random.normal(kc, (1, 1, k), dtype=jnp.float32) * 0.5   # Conv1d(1,1,k)
    lin_w = jax.random.normal(kl, (2, C), dtype=jnp.float32) * 0.1       # Linear(C,2)

    out = jax.block_until_ready(eca_forward(x, conv_w, lin_w))
    ref = eca_reference(x, conv_w, lin_w)
    assert out.shape == (B, 2, 1, 1), out.shape
    assert jnp.allclose(out, ref, rtol=1e-2, atol=1e-3), (out, ref)

    # --- test 2: ragged batch + ragged spatial tiles (exercise masking path) ---
    B2, C2, H2, W2 = 10, 8, 20, 20
    k2 = _eca_k(C2)
    kx, kc, kl, key = jax.random.split(key, 4)
    x2 = jax.random.normal(kx, (B2, C2, H2, W2), dtype=jnp.float32)
    conv_w2 = jax.random.normal(kc, (1, 1, k2), dtype=jnp.float32) * 0.5
    lin_w2 = jax.random.normal(kl, (2, C2), dtype=jnp.float32) * 0.1

    out2 = jax.block_until_ready(
        eca_forward(x2, conv_w2, lin_w2, target_block_bytes=16 * 1024))
    ref2 = eca_reference(x2, conv_w2, lin_w2)
    assert out2.shape == (B2, 2, 1, 1), out2.shape
    assert jnp.allclose(out2, ref2, rtol=1e-2, atol=1e-3), (out2, ref2)

    print("KERNEL_OK")
</pallas_src>

<mosaic_0001>
module attributes {stable_mosaic.version = 11 : i64} {
  func.func @eca_kernel(%arg0: i32, %arg1: i32, %arg2: memref<2x16x256xf32, #tpu.memory_space<vmem>>, %arg3: memref<16x16xf32, #tpu.memory_space<vmem>>, %arg4: memref<16x2xf32, #tpu.memory_space<vmem>>, %arg5: memref<2x2xf32, #tpu.memory_space<vmem>>, %arg6: memref<2x16xf32, #tpu.memory_space<vmem>>) attributes {dimension_semantics = [#tpu.dimension_semantics<parallel>, #tpu.dimension_semantics<arbitrary>], iteration_bounds = array<i64: 1, 1>, scalar_prefetch = 0 : i64, scratch_operands = 1 : i64, tpu.core_type = #tpu.core_type<tc>, window_params = [{transform_indices = @transform_0, window_bounds = array<i64: 2, 16, 256>}, {pipeline_mode = #tpu.pipeline_mode<synchronous>, transform_indices = @transform_1, window_bounds = array<i64: 16, 16>}, {pipeline_mode = #tpu.pipeline_mode<synchronous>, transform_indices = @transform_2, window_bounds = array<i64: 16, 2>}, {transform_indices = @transform_3, window_bounds = array<i64: 2, 2>}]} {
    %c0_i32 = arith.constant 0 : i32
    %0 = arith.cmpi eq, %arg1, %c0_i32 : i32
    %1 = arith.extui %0 : i1 to i32
    %c0_i32_0 = arith.constant 0 : i32
    %2 = arith.cmpi ne, %1, %c0_i32_0 : i32
    scf.if %2 {
      %cst_9 = arith.constant 0.000000e+00 : f32
      %11 = vector.broadcast %cst_9 : f32 to vector<2x16xf32>
      %c0_10 = arith.constant 0 : index
      %c0_11 = arith.constant 0 : index
      %12 = vector.load %arg6[%c0_10, %c0_11] : memref<2x16xf32, #tpu.memory_space<vmem>>, vector<2x16xf32>
      tpu.vector_store %arg6[%c0_10, %c0_11], %11 {strides = array<i32>} : memref<2x16xf32, #tpu.memory_space<vmem>>, vector<2x16xf32>,
    } else {
    }
    %c0 = arith.constant 0 : index
    %c0_1 = arith.constant 0 : index
    %c0_2 = arith.constant 0 : index
    %3 = vector.load %arg2[%c0, %c0_1, %c0_2] : memref<2x16x256xf32, #tpu.memory_space<vmem>>, vector<2x16x256xf32>
    %c0_3 = arith.constant 0 : index
    %c0_4 = arith.constant 0 : index
    %4 = vector.load %arg6[%c0_3, %c0_4] : memref<2x16xf32, #tpu.memory_space<vmem>>, vector<2x16xf32>
    %cst = arith.constant dense<0.000000e+00> : vector<2x16xf32>
    %5 = vector.multi_reduction <add>, %3, %cst [2] : vector<2x16x256xf32> to vector<2x16xf32>
    %6 = arith.addf %4, %5 : vector<2x16xf32>
    %c0_5 = arith.constant 0 : index
    %c0_6 = arith.constant 0 : index
    %7 = vector.load %arg6[%c0_5, %c0_6] : memref<2x16xf32, #tpu.memory_space<vmem>>, vector<2x16xf32>
    tpu.vector_store %arg6[%c0_5, %c0_6], %6 {strides = array<i32>} : memref<2x16xf32, #tpu.memory_space<vmem>>, vector<2x16xf32>,
    %c0_i32_7 = arith.constant 0 : i32
    %8 = arith.cmpi eq, %arg1, %c0_i32_7 : i32
    %9 = arith.extui %8 : i1 to i32
    %c0_i32_8 = arith.constant 0 : i32
    %10 = arith.cmpi ne, %9, %c0_i32_8 : i32
    scf.if %10 {
      %c0_9 = arith.constant 0 : index
      %c0_10 = arith.constant 0 : index
      %11 = vector.load %arg6[%c0_9, %c0_10] : memref<2x16xf32, #tpu.memory_space<vmem>>, vector<2x16xf32>
      %cst_11 = arith.constant 3.906250e-03 : f32
      %12 = vector.broadcast %cst_11 : f32 to vector<2x16xf32>
      %13 = arith.mulf %11, %12 : vector<2x16xf32>
      %c0_12 = arith.constant 0 : index
      %c0_13 = arith.constant 0 : index
      %14 = vector.load %arg3[%c0_12, %c0_13] : memref<16x16xf32, #tpu.memory_space<vmem>>, vector<16x16xf32>
      %cst_14 = arith.constant dense<0.000000e+00> : vector<2x16xf32>
      %15 = tpu.matmul %13, %14, %cst_14 {dimension_numbers = #tpu.dot_dimension_numbers<[1], [0], [0], [1], [0, 0, 1, 1], [], []>} : vector<2x16xf32>, vector<16x16xf32>, vector<2x16xf32> -> vector<2x16xf32>
      %cst_15 = arith.constant 0.000000e+00 : f32
      %16 = vector.broadcast %cst_15 : f32 to vector<2x16xf32>
      %17 = arith.maximumf %15, %16 : vector<2x16xf32>
      %c0_16 = arith.constant 0 : index
      %c0_17 = arith.constant 0 : index
      %18 = vector.load %arg4[%c0_16, %c0_17] : memref<16x2xf32, #tpu.memory_space<vmem>>, vector<16x2xf32>
      %cst_18 = arith.constant dense<0.000000e+00> : vector<2x2xf32>
      %19 = tpu.matmul %17, %18, %cst_18 {dimension_numbers = #tpu.dot_dimension_numbers<[1], [0], [0], [1], [0, 0, 1, 1], [], []>} : vector<2x16xf32>, vector<16x2xf32>, vector<2x2xf32> -> vector<2x2xf32>
      %cst_19 = arith.constant 0.000000e+00 : f32
      %20 = vector.broadcast %cst_19 : f32 to vector<2x2xf32>
      %21 = arith.maximumf %19, %20 : vector<2x2xf32>
      %cst_20 = arith.constant dense<0xFF800000> : vector<2xf32>
      %22 = vector.multi_reduction <maximumf>, %21, %cst_20 [1] : vector<2x2xf32> to vector<2xf32>
      %23 = vector.shape_cast %22 : vector<2xf32> to vector<2x1xf32>
      %24 = vector.broadcast %23 : vector<2x1xf32> to vector<2x2xf32>
      %25 = arith.subf %21, %24 : vector<2x2xf32>
      %26 = math.exp %25 : vector<2x2xf32>
      %cst_21 = arith.constant dense<0.000000e+00> : vector<2xf32>
      %27 = vector.multi_reduction <add>, %26, %cst_21 [1] : vector<2x2xf32> to vector<2xf32>
      %28 = vector.shape_cast %27 : vector<2xf32> to vector<2x1xf32>
      %29 = vector.broadcast %28 : vector<2x1xf32> to vector<2x2xf32>
      %30 = arith.divf %26, %29 : vector<2x2xf32>
      %c0_22 = arith.constant 0 : index
      %c0_23 = arith.constant 0 : index
      %31 = vector.load %arg5[%c0_22, %c0_23] : memref<2x2xf32, #tpu.memory_space<vmem>>, vector<2x2xf32>
      tpu.vector_store %arg5[%c0_22, %c0_23], %30 {strides = array<i32>} : memref<2x2xf32, #tpu.memory_space<vmem>>, vector<2x2xf32>,
    } else {
    }
    return
  }
  func.func @transform_0(%arg0: i32, %arg1: i32) -> (i32, i32, i32) {
    %c0_i32 = arith.constant 0 : i32
    %c0_i32_0 = arith.constant 0 : i32
    return %arg0, %c0_i32, %arg1 : i32, i32, i32
  }
  func.func @transform_1(%arg0: i32, %arg1: i32) -> (i32, i32) {
    %c0_i32 = arith.constant 0 : i32
    %c0_i32_0 = arith.constant 0 : i32
    %c0_i32_1 = arith.constant 0 : i32
    return %c0_i32, %c0_i32_0 : i32, i32
  }
  func.func @transform_2(%arg0: i32, %arg1: i32) -> (i32, i32) {
    %c0_i32 = arith.constant 0 : i32
    %c0_i32_0 = arith.constant 0 : i32
    %c0_i32_1 = arith.constant 0 : i32
    return %c0_i32, %c0_i32_0 : i32, i32
  }
  func.func @transform_3(%arg0: i32, %arg1: i32) -> (i32, i32) {
    %c0_i32 = arith.constant 0 : i32
    %c0_i32_0 = arith.constant 0 : i32
    return %arg0, %c0_i32 : i32, i32
  }
}

</mosaic_0001>

<llo_original>
// kernel: tpu_custom_call.1
$region0: #{tpu_custom_call.1}
  #allocation0 [shape = 'u32[]', space=smem, size = 0x4, offset = 0x4, fixed_abs, tag = 'smem constant byte address 0x4 - core index']
  #allocation1 [shape = 'u32[72,128]{1,0:T(1,128)}', space=vmem, size = 0x9000, scoped, tag = 'internal scratch']
  #allocation2 [shape = 'f32[2,16]{1,0:T(2,128)}', space=vmem, size = 0x400, scoped, tag = 'scratch operand']
  %s0 = inlined_call_operand.hbm [shape: f32[2,16,256], index: 0, kind: input, shape index: {}]
  %s1 = inlined_call_operand.vmem [shape: f32[16,16], index: 1, kind: input, shape index: {}]
  %s2 = inlined_call_operand.vmem [shape: f32[16,2], index: 2, kind: input, shape index: {}]
  %s3 = inlined_call_operand.hbm [shape: f32[2,2], index: 3, kind: output, shape index: {}]
  %s4 = sld [smem:[#allocation0]]
  $region34: #{tpu_custom_call.1} parent=0
    _
  %s6 = ssub.s32 1, %s4
  %s7 = scalar_select 0, %s6, %s4
  $region1: #{tpu_custom_call.1} parent=0
    #allocation3 [shape = 'u8[32768]{0}', space=vmem, size = 0x8000, scoped, tag = 'input window, operand 0, single buffered']
    #allocation4 [shape = 's32[1]{0}', space=sflag, size = 0x4, scoped, tag = 'scoped memory for tpu_custom_call.1']
    #allocation5 [shape = 's32[1]{0}', space=sflag, size = 0x4, scoped, tag = 'scoped memory for tpu_custom_call.1']
    #allocation6 [shape = 'u8[1024]{0}', space=vmem, size = 0x400, scoped, tag = 'output window, operand 0, single buffered']
    %8 = vsyncpa [#allocation4], 0
    %9 = vsyncpa [#allocation5], 0
    // Predicated region
    $region2: #{tpu_custom_call.1} parent=1 // pred_check
      _
    $region3: #{tpu_custom_call.1} parent=1 // pred_check_branch
      %11 = sbr.rel (0) target = $region5
    $region4: #{tpu_custom_call.1} parent=1 // pred_region
      %13 = vsyncadd [#allocation4], 0
      %s14 = sshll.u32 %s0, 4
      %s15 = int_to_ptr.hbm [resolvable:$true] %s14
      %s16 = sshll.u32 [#allocation3], 4
      %s17 = int_to_ptr.vmem [resolvable:$true] %s16
      %22 = dma.hbm_to_vmem [thread:$0]  %s15, 1024, %s17, [#allocation4], 256, 256, 16
    $region5: #{tpu_custom_call.1} parent=1 // pred_fallthru
      _
    // Predicated region
    $region6: #{tpu_custom_call.1} parent=1 // pred_check
      _
    $region7: #{tpu_custom_call.1} parent=1 // pred_check_branch
      %24 = sbr.rel (0) target = $region9
    $region8: #{tpu_custom_call.1} parent=1 // pred_region
      _
    $region9: #{tpu_custom_call.1} parent=1 // pred_fallthru
      _
    // Predicated region
    $region10: #{tpu_custom_call.1} parent=1 // pred_check
      _
    $region11: #{tpu_custom_call.1} parent=1 // pred_check_branch
      %26 = sbr.rel (0) target = $region13
    $region12: #{tpu_custom_call.1} parent=1 // pred_region
      _
    $region13: #{tpu_custom_call.1} parent=1 // pred_fallthru
      _
    // Predicated region
    $region14: #{tpu_custom_call.1} parent=1 // pred_check
      _
    $region15: #{tpu_custom_call.1} parent=1 // pred_check_branch
      %28 = sbr.rel (0) target = $region17
    $region16: #{tpu_custom_call.1} parent=1 // pred_region
      %30 = dma.done [#allocation4], 1024
    $region17: #{tpu_custom_call.1} parent=1 // pred_fallthru
      _
    %p31 = scmp.eq.s32.totalorder 0, 0
    // Predicated region
    $region18: #{tpu_custom_call.1} parent=1 // pred_check
      %p32 = pneg %p31
    $region19: #{tpu_custom_call.1} parent=1 // pred_check_branch
      %34 = sbr.rel (%p32) target = $region21
    $region20: #{tpu_custom_call.1} parent=1 // pred_region
      %vm35 = vcmask 123904
      %36 = vst.msk [vmem:[#allocation2] sm:$0x3] %vm35, 0.0
    $region21: #{tpu_custom_call.1} parent=1 // pred_fallthru
      _
    %v37 = vld [vmem:[#allocation3] sm:$0xff]
    %v38 = vld [vmem:[#allocation3 + $0x8] sm:$0xff]
    %v39 = vld [vmem:[#allocation3 + $0x10] sm:$0xff]
    %v40 = vld [vmem:[#allocation3 + $0x18] sm:$0xff]
    %v41 = vld [vmem:[#allocation3 + $0x20] sm:$0xff]
    %v42 = vld [vmem:[#allocation3 + $0x28] sm:$0xff]
    %v43 = vld [vmem:[#allocation3 + $0x30] sm:$0xff]
    %v44 = vld [vmem:[#allocation3 + $0x38] sm:$0xff]
    %v45 = vld [vmem:[#allocation2] sm:$0x3]
    %v46 = vadd.f32 %v37, %v38
    %47 = vadd.xlane.f32.xlu0 %v46
    %v48 = vpop.xlane.xlu0 %47
    %v49 = vadd.f32 %v39, %v40
    %50 = vadd.xlane.f32.xlu0 %v49
    %v51 = vpop.xlane.xlu0 %50
    %v52 = vadd.f32 %v41, %v42
    %53 = vadd.xlane.f32.xlu0 %v52
    %v54 = vpop.xlane.xlu0 %53
    %v55 = vadd.f32 %v43, %v44
    %56 = vadd.xlane.f32.xlu0 %v55
    %v57 = vpop.xlane.xlu0 %56
    %v62 = vlaneseq
    %v63 = vand.u32 %v62, 127
    %v64 = vperm.slane %v48, %v63
    %v65 = vadd.s32 %v63, 4294967288
    %v66 = vperm.slane %v51, %v65
    %vm67 = vcmask 130112
    %v68 = vsel %vm67, %v66, %v64
    %v69 = vperm.slane %v54, %v63
    %v70 = vperm.slane %v57, %v65
    %v71 = vsel %vm67, %v70, %v69
    %vm72 = vcmask 1041409
    %v73 = vsel %vm72, %v71, %v68
    %v75 = vadd.f32 %v45, %v73
    %vm76 = vcmask 123904
    %77 = vst.msk [vmem:[#allocation2] sm:$0x3] %vm76, %v75
    // Predicated region
    $region22: #{tpu_custom_call.1} parent=1 // pred_check
      %p78 = pneg %p31
    $region23: #{tpu_custom_call.1} parent=1 // pred_check_branch
      %80 = sbr.rel (%p78) target = $region25
    $region24: #{tpu_custom_call.1} parent=1 // pred_region
      %v81 = vld [vmem:[#allocation2] sm:$0x3]
      %v82 = vmul.f32 %v81, 0.00390625
      %v83 = vld [vmem:[%s1] sm:$0xff]
      %v84 = vld [vmem:[%s1 + $0x8] sm:$0xff]
      %vm85 = vcmask 130048
      %v87 = vsel %vm85, %v82, 0
      %89 = vmatpush.msra.mxu0 0.0
      %90 = vmatpush.msra.mxu0 0.0
      %91 = vmatpush.msra.mxu0 0.0
      %92 = vmatpush.msra.mxu0 0.0
      %93 = vmatpush.msra.mxu0 0.0
      %94 = vmatpush.msra.mxu0 0.0
      %95 = vmatpush.msra.mxu0 0.0
      %96 = vmatpush.msra.mxu0 0.0
      %97 = vmatpush.msra.mxu0 0.0
      %98 = vmatpush.msra.mxu0 0.0
      %99 = vmatpush.msra.mxu0 0.0
      %100 = vmatpush.msra.mxu0 0.0
      %101 = vmatpush.msra.mxu0 0.0
      %102 = vmatpush.msra.mxu0 0.0
      %103 = vmatpush.msra.mxu0 %v84
      %104 = vmatpush.msra.mxu0 %v83
      %105 = vmatmul.f32.gmra.mxu0 %v87
      %v106 = vpop.f32.mrf.mxu0
      %v107 = vadd.f32 0.0, %v106
      %108 = vdwg.mxu0
      %v109 = vmax.f32 %v107, 0.0
      %v110 = vld [vmem:[%s2] sm:$0xff]
      %v111 = vld [vmem:[%s2 + $0x8] sm:$0xff]
      %v113 = vsel %vm85, %v109, 0
      %115 = vmatpush.msra.mxu0 0.0
      %116 = vmatpush.msra.mxu0 0.0
      %117 = vmatpush.msra.mxu0 0.0
      %118 = vmatpush.msra.mxu0 0.0
      %119 = vmatpush.msra.mxu0 0.0
      %120 = vmatpush.msra.mxu0 0.0
      %121 = vmatpush.msra.mxu0 0.0
      %122 = vmatpush.msra.mxu0 0.0
      %123 = vmatpush.msra.mxu0 0.0
      %124 = vmatpush.msra.mxu0 0.0
      %125 = vmatpush.msra.mxu0 0.0
      %126 = vmatpush.msra.mxu0 0.0
      %127 = vmatpush.msra.mxu0 0.0
      %128 = vmatpush.msra.mxu0 0.0
      %129 = vmatpush.msra.mxu0 %v111
      %130 = vmatpush.msra.mxu0 %v110
      %131 = vmatmul.f32.gmra.mxu0 %v113
      %v132 = vpop.f32.mrf.mxu0
      %v133 = vadd.f32 0.0, %v132
      %134 = vdwg.mxu0
      %v135 = vmax.f32 %v133, 0.0
      %vm136 = vcmask 9216
      %v137 = vsel %vm136, %v135, -inf
      %138 = vmax.xlane.f32.xlu0 %v137
      %v139 = vpop.xlane.xlu0 %138
      %v140 = vsub.f32 %v135, %v139
      %v141 = vmul.f32 %v140, 1.442695
      %v142 = vpow.pop %v141
      %v143 = vsel %vm136, %v142, 0.0
      %144 = vadd.xlane.f32.xlu0 %v143
      %v145 = vpop.xlane.xlu0 %144
      %v146 = vrcp.pop %v145
      %v147 = vmul.f32 %v145, %v146
      %v148 = vsub.f32 1.0, %v147
      %v149 = vmul.f32 %v146, %v148
      %v150 = vadd.f32 %v146, %v149
      %vm151 = vweird.f32 %v145
      %vm152 = vweird.f32 %v146
      %vm153 = vmor %vm151, %vm152
      %v154 = vsel %vm153, %v146, %v150
      %v155 = vand.u32 2147483647, %v145
      %vm156 = vcmp.eq.f32.partialorder %v155, 8.507059e+37
      %v157 = vand.u32 %v145, 2147483648
      %v158 = vor.u32 1.1754944e-38, %v157
      %v159 = vsel %vm156, %v158, %v154
      %v160 = vmul.f32 %v142, %v159
      %161 = vst.msk [vmem:[#allocation6] sm:$0x3] %vm136, %v160
    $region25: #{tpu_custom_call.1} parent=1 // pred_fallthru
      _
    // Predicated region
    $region26: #{tpu_custom_call.1} parent=1 // pred_check
      _
    $region27: #{tpu_custom_call.1} parent=1 // pred_check_branch
      %163 = sbr.rel (0) target = $region29
    $region28: #{tpu_custom_call.1} parent=1 // pred_region
      %165 = vsyncadd [#allocation5], 0
      %s167 = sshll.u32 [#allocation6], 4
      %s168 = int_to_ptr.vmem [resolvable:$true] %s167
      %s169 = sshll.u32 %s3, 4
      %s170 = int_to_ptr.hbm [resolvable:$true] %s169
      %172 = dma.vmem_to_hbm [thread:$0]  %s168, 32, %s170, [#allocation5]
    $region29: #{tpu_custom_call.1} parent=1 // pred_fallthru
      _
    // Predicated region
    $region30: #{tpu_custom_call.1} parent=1 // pred_check
      _
    $region31: #{tpu_custom_call.1} parent=1 // pred_check_branch
      %174 = sbr.rel (0) target = $region33
    $region32: #{tpu_custom_call.1} parent=1 // pred_region
      %176 = dma.done [#allocation5], 32
    $region33: #{tpu_custom_call.1} parent=1 // pred_fallthru
      _
    %177 = vsyncpa [#allocation4], 1
    %178 = vsyncpa [#allocation5], 1

</llo_original>
